<compile_context>
chip_gen: v7x
topology: tpu7x:2x2x1
jax: 0.10.0
libtpu: 0.0.40
codegen_flags: <defaults>
</compile_context>

<pallas_src>
import jax
import jax.numpy as jnp
from jax.experimental import pallas as pl
from jax.experimental.pallas import tpu as pltpu


def _pick_batch_block(n):
    """Largest divisor of n that is <= 8 while keeping >= 2 grid steps
    (so both v7x TensorCores get work via the 'parallel' grid axis)."""
    best = 1
    for b in range(1, min(n, 8) + 1):
        if n % b == 0 and (n == 1 or n // b >= 2):
            best = b
    return best


# ----------------------------------------------------------------------------
# Fused masked-conv kernel: single (O, K*K*C) x (K*K*C, M) matmul per image.
# ----------------------------------------------------------------------------
@jax.jit
def conv2d_masked_pallas(x, weight, mask, bias):
    """x: (N, C, H, W) f32 -> (N, O, OH, OW) f32 (VALID conv, stride 1)."""
    N, C, H, W = x.shape
    O, C_w, K, _ = weight.shape
    assert C == C_w
    OH, OW = H - K + 1, W - K + 1
    OHW = OH * W                                   # valid flat output width per image
    M = ((OHW + 127) // 128) * 128                 # lane-dense (multiple-of-128) width
    HWp = H * W + (K - 1) + (M - OHW)              # flat input width so every shifted
                                                   # length-M slice stays in bounds
    KKC = K * K * C

    B_blk = _pick_batch_block(N)
    grid = (N // B_blk,)

    # ---- wrapper-side glue (cheap, fused under jit, no big transposes) ----
    x_flat = jnp.pad(x.reshape(N, C, H * W),
                     ((0, 0), (0, 0), (0, HWp - H * W)))
    # forward()'s re-masking hoisted out of the kernel; (O, K*K*C) layout is
    # (kh,kw)-major to match the in-kernel concatenation of shifted slices.
    w_flat = jnp.transpose(weight * mask, (0, 2, 3, 1)).reshape(O, KKC)
    b_col = bias.reshape(O, 1)

    def kernel(x_ref, w_ref, b_ref, o_ref):
        # x_ref: (B_blk, C, HWp)   flat input slab(s) for this batch block
        # w_ref: (O, K*K*C)        pre-masked weight, (kh,kw)-major rows
        # b_ref: (O, 1)            bias
        # o_ref: (B_blk, O, M)     lane-dense output rows (spatial on lanes)
        w = w_ref[...]
        b_vec = b_ref[...]
        for b in range(B_blk):                                  # static unroll
            slabs = [x_ref[b, :, kh * W + kw: kh * W + kw + M]  # K*K x (C, M)
                     for kh in range(K) for kw in range(K)]
            rhs = jnp.concatenate(slabs, axis=0)                # (K*K*C, M)
            acc = jnp.dot(w, rhs, preferred_element_type=jnp.float32)
            o_ref[b, :, :] = (acc + b_vec).astype(o_ref.dtype)

    out_flat = pl.pallas_call(
        kernel,
        out_shape=jax.ShapeDtypeStruct((N, O, M), jnp.float32),
        grid=grid,
        in_specs=[
            pl.BlockSpec((B_blk, C, HWp), lambda n: (n, 0, 0)),
            pl.BlockSpec((O, KKC), lambda n: (0, 0)),
            pl.BlockSpec((O, 1), lambda n: (0, 0)),
        ],
        out_specs=pl.BlockSpec((B_blk, O, M), lambda n: (n, 0, 0)),
        compiler_params=pltpu.CompilerParams(
            dimension_semantics=("parallel",)),
    )(x_flat, w_flat, b_col)

    # (N, O, M) -> drop lane pad -> free contiguous reshape to (N, O, OH, W)
    # -> drop the W-OW wrap-around columns.  No transposes.
    return out_flat[:, :, :OHW].reshape(N, O, OH, W)[:, :, :, :OW]


# ----------------------------------------------------------------------------
# Deterministic parameter construction (mirrors __init__)
# ----------------------------------------------------------------------------
def make_params(key, in_channels, out_channels, kernel_size):
    # xavier_uniform_ on (O, C, K, K): fan_in = C*K*K, fan_out = O*K*K
    fan_in = in_channels * kernel_size * kernel_size
    fan_out = out_channels * kernel_size * kernel_size
    bound = (6.0 / (fan_in + fan_out)) ** 0.5
    weight = jax.random.uniform(
        key, (out_channels, in_channels, kernel_size, kernel_size),
        dtype=jnp.float32, minval=-bound, maxval=bound)

    # TODO(synk): original mask comes from networkx.barabasi_albert_graph with
    # unseeded randomness (and buggy ragged indexing); replaced with a
    # deterministic binary (out, in) connectivity mask that keeps every input
    # and output channel connected, broadcast over the KxK window.
    o_idx = jnp.arange(out_channels)[:, None]
    c_idx = jnp.arange(in_channels)[None, :]
    conn = (((o_idx + c_idx) % 2 == 0) | (o_idx % in_channels == c_idx))
    mask = conn.astype(jnp.float32)[:, :, None, None] * jnp.ones(
        (1, 1, kernel_size, kernel_size), jnp.float32)

    weight = weight * mask                       # __init__ does weight.data *= mask
    bias = jnp.zeros((out_channels,), jnp.float32)
    return weight, mask, bias


if __name__ == "__main__":
    N, C_in, C_out, H, W, K = 2, 4, 8, 16, 16, 3

    key = jax.random.PRNGKey(0)
    k_x, k_w = jax.random.split(key)
    x = jax.random.normal(k_x, (N, C_in, H, W), dtype=jnp.float32)
    weight, mask, bias = make_params(k_w, C_in, C_out, K)

    out = conv2d_masked_pallas(x, weight, mask, bias)
    out = jax.block_until_ready(out)

    # sanity check against XLA conv reference
    ref = jax.lax.conv_general_dilated(
        x, weight * mask, window_strides=(1, 1), padding="VALID",
        dimension_numbers=("NCHW", "OIHW", "NCHW")) + bias[None, :, None, None]
    assert out.shape == (N, C_out, H - K + 1, W - K + 1)
    assert jnp.allclose(out, ref, atol=1e-4, rtol=1e-4)

    print("KERNEL_OK")
</pallas_src>

<mosaic_0001>
module attributes {stable_mosaic.version = 11 : i64} {
  func.func @kernel(%arg0: i32, %arg1: memref<1x4x290xf32, #tpu.memory_space<vmem>>, %arg2: memref<8x36xf32, #tpu.memory_space<vmem>>, %arg3: memref<8x1xf32, #tpu.memory_space<vmem>>, %arg4: memref<1x8x256xf32, #tpu.memory_space<vmem>>) attributes {dimension_semantics = [#tpu.dimension_semantics<parallel>], iteration_bounds = array<i64: 2>, scalar_prefetch = 0 : i64, scratch_operands = 0 : i64, tpu.core_type = #tpu.core_type<tc>, window_params = [{transform_indices = @transform_0, window_bounds = array<i64: 1, 4, 290>}, {pipeline_mode = #tpu.pipeline_mode<synchronous>, transform_indices = @transform_1, window_bounds = array<i64: 8, 36>}, {pipeline_mode = #tpu.pipeline_mode<synchronous>, transform_indices = @transform_2, window_bounds = array<i64: 8, 1>}, {transform_indices = @transform_3, window_bounds = array<i64: 1, 8, 256>}]} {
    %c0 = arith.constant 0 : index
    %c0_0 = arith.constant 0 : index
    %0 = vector.load %arg2[%c0, %c0_0] : memref<8x36xf32, #tpu.memory_space<vmem>>, vector<8x36xf32>
    %c0_1 = arith.constant 0 : index
    %c0_2 = arith.constant 0 : index
    %1 = vector.load %arg3[%c0_1, %c0_2] : memref<8x1xf32, #tpu.memory_space<vmem>>, vector<8x1xf32>
    %c0_3 = arith.constant 0 : index
    %c0_4 = arith.constant 0 : index
    %c0_5 = arith.constant 0 : index
    %2 = vector.load %arg1[%c0_3, %c0_4, %c0_5] : memref<1x4x290xf32, #tpu.memory_space<vmem>>, vector<1x4x256xf32>
    %3 = vector.shape_cast %2 : vector<1x4x256xf32> to vector<4x256xf32>
    %c0_6 = arith.constant 0 : index
    %c0_7 = arith.constant 0 : index
    %c1 = arith.constant 1 : index
    %4 = vector.load %arg1[%c0_6, %c0_7, %c1] : memref<1x4x290xf32, #tpu.memory_space<vmem>>, vector<1x4x256xf32>
    %5 = vector.shape_cast %4 : vector<1x4x256xf32> to vector<4x256xf32>
    %c0_8 = arith.constant 0 : index
    %c0_9 = arith.constant 0 : index
    %c2 = arith.constant 2 : index
    %6 = vector.load %arg1[%c0_8, %c0_9, %c2] : memref<1x4x290xf32, #tpu.memory_space<vmem>>, vector<1x4x256xf32>
    %7 = vector.shape_cast %6 : vector<1x4x256xf32> to vector<4x256xf32>
    %c0_10 = arith.constant 0 : index
    %c0_11 = arith.constant 0 : index
    %c16 = arith.constant 16 : index
    %8 = vector.load %arg1[%c0_10, %c0_11, %c16] : memref<1x4x290xf32, #tpu.memory_space<vmem>>, vector<1x4x256xf32>
    %9 = vector.shape_cast %8 : vector<1x4x256xf32> to vector<4x256xf32>
    %c0_12 = arith.constant 0 : index
    %c0_13 = arith.constant 0 : index
    %c17 = arith.constant 17 : index
    %10 = vector.load %arg1[%c0_12, %c0_13, %c17] : memref<1x4x290xf32, #tpu.memory_space<vmem>>, vector<1x4x256xf32>
    %11 = vector.shape_cast %10 : vector<1x4x256xf32> to vector<4x256xf32>
    %c0_14 = arith.constant 0 : index
    %c0_15 = arith.constant 0 : index
    %c18 = arith.constant 18 : index
    %12 = vector.load %arg1[%c0_14, %c0_15, %c18] : memref<1x4x290xf32, #tpu.memory_space<vmem>>, vector<1x4x256xf32>
    %13 = vector.shape_cast %12 : vector<1x4x256xf32> to vector<4x256xf32>
    %c0_16 = arith.constant 0 : index
    %c0_17 = arith.constant 0 : index
    %c32 = arith.constant 32 : index
    %14 = vector.load %arg1[%c0_16, %c0_17, %c32] : memref<1x4x290xf32, #tpu.memory_space<vmem>>, vector<1x4x256xf32>
    %15 = vector.shape_cast %14 : vector<1x4x256xf32> to vector<4x256xf32>
    %c0_18 = arith.constant 0 : index
    %c0_19 = arith.constant 0 : index
    %c33 = arith.constant 33 : index
    %16 = vector.load %arg1[%c0_18, %c0_19, %c33] : memref<1x4x290xf32, #tpu.memory_space<vmem>>, vector<1x4x256xf32>
    %17 = vector.shape_cast %16 : vector<1x4x256xf32> to vector<4x256xf32>
    %c0_20 = arith.constant 0 : index
    %c0_21 = arith.constant 0 : index
    %c34 = arith.constant 34 : index
    %18 = vector.load %arg1[%c0_20, %c0_21, %c34] : memref<1x4x290xf32, #tpu.memory_space<vmem>>, vector<1x4x256xf32>
    %19 = vector.shape_cast %18 : vector<1x4x256xf32> to vector<4x256xf32>
    %20 = tpu.concatenate %3, %5, %7, %9, %11, %13, %15, %17, %19 in 0 : vector<4x256xf32>, vector<4x256xf32>, vector<4x256xf32>, vector<4x256xf32>, vector<4x256xf32>, vector<4x256xf32>, vector<4x256xf32>, vector<4x256xf32>, vector<4x256xf32> -> vector<36x256xf32>
    %cst = arith.constant dense<0.000000e+00> : vector<8x256xf32>
    %21 = tpu.matmul %0, %20, %cst {dimension_numbers = #tpu.dot_dimension_numbers<[1], [0], [0], [1], [0, 0, 1, 1], [], []>} : vector<8x36xf32>, vector<36x256xf32>, vector<8x256xf32> -> vector<8x256xf32>
    %22 = vector.broadcast %1 : vector<8x1xf32> to vector<8x256xf32>
    %23 = arith.addf %21, %22 : vector<8x256xf32>
    %c0_22 = arith.constant 0 : index
    %c0_23 = arith.constant 0 : index
    %c0_24 = arith.constant 0 : index
    %24 = vector.load %arg4[%c0_22, %c0_23, %c0_24] : memref<1x8x256xf32, #tpu.memory_space<vmem>>, vector<1x8x256xf32>
    %25 = vector.shape_cast %24 : vector<1x8x256xf32> to vector<8x256xf32>
    %26 = vector.shape_cast %23 : vector<8x256xf32> to vector<1x8x256xf32>
    tpu.vector_store %arg4[%c0_22, %c0_23, %c0_24], %26 {strides = array<i32>} : memref<1x8x256xf32, #tpu.memory_space<vmem>>, vector<1x8x256xf32>,
    return
  }
  func.func @transform_0(%arg0: i32) -> (i32, i32, i32) {
    %c0_i32 = arith.constant 0 : i32
    %c0_i32_0 = arith.constant 0 : i32
    %c0_i32_1 = arith.constant 0 : i32
    return %arg0, %c0_i32, %c0_i32_0 : i32, i32, i32
  }
  func.func @transform_1(%arg0: i32) -> (i32, i32) {
    %c0_i32 = arith.constant 0 : i32
    %c0_i32_0 = arith.constant 0 : i32
    %c0_i32_1 = arith.constant 0 : i32
    return %c0_i32, %c0_i32_0 : i32, i32
  }
  func.func @transform_2(%arg0: i32) -> (i32, i32) {
    %c0_i32 = arith.constant 0 : i32
    %c0_i32_0 = arith.constant 0 : i32
    %c0_i32_1 = arith.constant 0 : i32
    return %c0_i32, %c0_i32_0 : i32, i32
  }
  func.func @transform_3(%arg0: i32) -> (i32, i32, i32) {
    %c0_i32 = arith.constant 0 : i32
    %c0_i32_0 = arith.constant 0 : i32
    %c0_i32_1 = arith.constant 0 : i32
    return %arg0, %c0_i32, %c0_i32_0 : i32, i32, i32
  }
}

</mosaic_0001>

<llo_original>
// kernel: conv2d_masked_pallas.1
$region0: #{conv2d_masked_pallas.1}
  #allocation0 [shape = 'u32[]', space=smem, size = 0x4, offset = 0x4, fixed_abs, tag = 'smem constant byte address 0x4 - core index']
  #allocation1 [shape = 'u32[144,128]{1,0:T(1,128)}', space=vmem, size = 0x12000, scoped, tag = 'internal scratch']
  %s0 = inlined_call_operand.vmem [shape: f32[2,4,290], index: 0, kind: input, shape index: {}]
  %s1 = inlined_call_operand.vmem [shape: f32[8,36], index: 1, kind: input, shape index: {}]
  %s2 = inlined_call_operand.vmem [shape: f32[8,1], index: 2, kind: input, shape index: {}]
  %s3 = inlined_call_operand.vmem [shape: f32[2,8,256], index: 3, kind: output, shape index: {}]
  %s4 = sld [smem:[#allocation0]]
  $region45: #{conv2d_masked_pallas.1} parent=0
    _
  %s6 = ssub.s32 1, %s4
  %s7 = scalar_select 0, %s6, %s4
  loop: start=0, step=1, limit=4
  $region2: #{conv2d_masked_pallas.1} parent=0 // loop_pre_header
    _
  $region3: #{conv2d_masked_pallas.1} parent=0 // loop_header
    %s9 = sphi 0, %s13
    %p10 = scmp.ge.s32.totalorder %s9, 4
    %s19 = sphi 0, %s21
    %s22 = sphi 0, %s19
    %s23 = sphi 0, %s22
    %s39 = sphi 0, %s23
    %s43 = sphi 0, %s43
    %s45 = sphi 0, %s43
    %s46 = sphi 0, %s45
    %s60 = sphi 0, %s46
    %s64 = sphi 0, %s64
    %s66 = sphi 0, %s64
    %s67 = sphi 0, %s66
    %s81 = sphi 0, %s67
    %s87 = sphi 0, %s89
    %s90 = sphi 0, %s87
    %s91 = sphi 0, %s90
    %s107 = sphi 0, %s91
  $region4: #{conv2d_masked_pallas.1} parent=0 // loop_header_branch
    %12 = sbr.rel (%p10) target = $region8
  $region5: #{conv2d_masked_pallas.1} parent=0 // loop_body
    %s14 = ssub.s32 %s9, 1
    %s15 = ssub.s32 %s9, 2
    %s16 = sadd.s32 %s9, 1
    %s17 = ssub.s32 %s9, %s16
    %p18 = scmp.eq.s32.totalorder %s17, 0
    %s20 = sadd.s32 %s19, 1
    %s21 = scalar_select %p18, %s19, %s20
    %p24 = pneg %p18
    %p25 = scmp.eq.s32.totalorder %s9, 1
    %p26 = por %p24, %p25
    %p27 = scmp.ne.s32.totalorder %s19, %s22
    %p28 = scmp.eq.s32.totalorder %s9, 0
    %p29 = por %p27, %p28
    %p30 = scmp.ne.s32.totalorder %s19, %s22
    %p31 = scmp.eq.s32.totalorder %s14, 1
    %p32 = por %p30, %p31
    %p33 = scmp.ne.s32.totalorder %s22, %s23
    %p34 = scmp.eq.s32.totalorder %s14, 0
    %p35 = por %p33, %p34
    %p36 = scmp.ne.s32.totalorder %s22, %s23
    %p37 = scmp.eq.s32.totalorder %s15, 1
    %p38 = por %p36, %p37
    %p40 = scmp.ne.s32.totalorder %s23, %s39
    %p41 = scmp.eq.s32.totalorder %s15, 0
    %p42 = por %p40, %p41
    %s44 = sadd.s32 %s43, 1
    %p47 = scmp.eq.s32.totalorder %s9, 1
    %p48 = scmp.ne.s32.totalorder %s43, %s45
    %p49 = scmp.eq.s32.totalorder %s9, 0
    %p50 = por %p48, %p49
    %p51 = scmp.ne.s32.totalorder %s43, %s45
    %p52 = scmp.eq.s32.totalorder %s14, 1
    %p53 = por %p51, %p52
    %p54 = scmp.ne.s32.totalorder %s45, %s46
    %p55 = scmp.eq.s32.totalorder %s14, 0
    %p56 = por %p54, %p55
    %p57 = scmp.ne.s32.totalorder %s45, %s46
    %p58 = scmp.eq.s32.totalorder %s15, 1
    %p59 = por %p57, %p58
    %p61 = scmp.ne.s32.totalorder %s46, %s60
    %p62 = scmp.eq.s32.totalorder %s15, 0
    %p63 = por %p61, %p62
    %s65 = sadd.s32 %s64, 1
    %p68 = scmp.eq.s32.totalorder %s9, 1
    %p69 = scmp.ne.s32.totalorder %s64, %s66
    %p70 = scmp.eq.s32.totalorder %s9, 0
    %p71 = por %p69, %p70
    %p72 = scmp.ne.s32.totalorder %s64, %s66
    %p73 = scmp.eq.s32.totalorder %s14, 1
    %p74 = por %p72, %p73
    %p75 = scmp.ne.s32.totalorder %s66, %s67
    %p76 = scmp.eq.s32.totalorder %s14, 0
    %p77 = por %p75, %p76
    %p78 = scmp.ne.s32.totalorder %s66, %s67
    %p79 = scmp.eq.s32.totalorder %s15, 1
    %p80 = por %p78, %p79
    %p82 = scmp.ne.s32.totalorder %s67, %s81
    %p83 = scmp.eq.s32.totalorder %s15, 0
    %p84 = por %p82, %p83
    %s85 = ssub.s32 %s9, %s16
    %p86 = scmp.eq.s32.totalorder %s85, 0
    %s88 = sadd.s32 %s87, 1
    %s89 = scalar_select %p86, %s87, %s88
    %p92 = pneg %p86
    %p93 = scmp.eq.s32.totalorder %s9, 1
    %p94 = por %p92, %p93
    %p95 = scmp.ne.s32.totalorder %s87, %s90
    %p96 = scmp.eq.s32.totalorder %s9, 0
    %p97 = por %p95, %p96
    %p98 = scmp.ne.s32.totalorder %s87, %s90
    %p99 = scmp.eq.s32.totalorder %s14, 1
    %p100 = por %p98, %p99
    %p101 = scmp.ne.s32.totalorder %s90, %s91
    %p102 = scmp.eq.s32.totalorder %s14, 0
    %p103 = por %p101, %p102
    %p104 = scmp.ne.s32.totalorder %s90, %s91
    %p105 = scmp.eq.s32.totalorder %s15, 1
    %p106 = por %p104, %p105
    %p108 = scmp.ne.s32.totalorder %s91, %s107
    %p109 = scmp.eq.s32.totalorder %s15, 0
    %p110 = por %p108, %p109
    %p111 = scmp.le.s32.totalorder 1, %s9
    %p112 = scmp.lt.s32.totalorder %s9, 3
    %p113 = pnand %p111, %p112
    %p114 = pneg %p113
    // Predicated region
    $region9: #{conv2d_masked_pallas.1} parent=5 // pred_check
      _
    $region10: #{conv2d_masked_pallas.1} parent=5 // pred_check_branch
      %116 = sbr.rel (%p113) target = $region12
    $region11: #{conv2d_masked_pallas.1} parent=5 // pred_region
      %s117 = ssub.s32 %s9, 1
      // Predicated region
      $region13: #{conv2d_masked_pallas.1} parent=11 // pred_check
        %p118 = pneg %p56
      $region14: #{conv2d_masked_pallas.1} parent=11 // pred_check_branch
        %120 = sbr.rel (%p118) target = $region16
      $region15: #{conv2d_masked_pallas.1} parent=11 // pred_region
        _
      $region16: #{conv2d_masked_pallas.1} parent=11 // pred_fallthru
        _
      // Predicated region
      $region17: #{conv2d_masked_pallas.1} parent=11 // pred_check
        %p121 = pneg %p77
      $region18: #{conv2d_masked_pallas.1} parent=11 // pred_check_branch
        %123 = sbr.rel (%p121) target = $region20
      $region19: #{conv2d_masked_pallas.1} parent=11 // pred_region
        _
      $region20: #{conv2d_masked_pallas.1} parent=11 // pred_fallthru
        _
    $region12: #{conv2d_masked_pallas.1} parent=5 // pred_fallthru
      _
    %p124 = scmp.lt.s32.totalorder %s9, 2
    // Predicated region
    $region21: #{conv2d_masked_pallas.1} parent=5 // pred_check
      %p125 = pneg %p124
    $region22: #{conv2d_masked_pallas.1} parent=5 // pred_check_branch
      %127 = sbr.rel (%p125) target = $region24
    $region23: #{conv2d_masked_pallas.1} parent=5 // pred_region
      // Predicated region
      $region25: #{conv2d_masked_pallas.1} parent=23 // pred_check
        %p128 = pneg %p29
      $region26: #{conv2d_masked_pallas.1} parent=23 // pred_check_branch
        %130 = sbr.rel (%p128) target = $region28
      $region27: #{conv2d_masked_pallas.1} parent=23 // pred_region
        %p131 = scmp.lt.s32.totalorder %s9, 1
        %s132 = scalar_select %p131, %s9, 1
        %s133 = smul.addr %s132, 3
        %s134 = smul.addr %s133, 4
        %s135 = scalar_lea.vmem %s0, %s134
      $region28: #{conv2d_masked_pallas.1} parent=23 // pred_fallthru
        _
    $region24: #{conv2d_masked_pallas.1} parent=5 // pred_fallthru
      _
    %p136 = scmp.le.s32.totalorder 1, %s9
    %p137 = scmp.lt.s32.totalorder %s9, 3
    %p138 = pnand %p136, %p137
    %p139 = pneg %p138
    // Predicated region
    $region29: #{conv2d_masked_pallas.1} parent=5 // pred_check
      _
    $region30: #{conv2d_masked_pallas.1} parent=5 // pred_check_branch
      %141 = sbr.rel (%p138) target = $region32
    $region31: #{conv2d_masked_pallas.1} parent=5 // pred_region
      %s142 = ssub.s32 %s9, 1
      %p143 = scmp.lt.s32.totalorder %s14, 1
      %s144 = scalar_select %p143, %s14, 1
      %s145 = smul.addr %s144, 3
      %s146 = smul.addr %s145, 4
      %s147 = scalar_lea.vmem %s0, %s146
      %p148 = pneg %p35
      %p149 = pneg %p32
      %p150 = pneg %p56
      %p151 = pneg %p53
      %p152 = pneg %p77
      %p153 = pneg %p74
      %p154 = pneg %p103
      %p155 = pneg %p100
      %p156 = scmp.lt.s32.totalorder %s14, 1
      %s157 = scalar_select %p156, %s14, 1
      %s158 = smul.addr %s157, 2
      %s159 = smul.addr %s158, 8
      %s160 = scalar_lea.vmem %s3, %s159
      %p161 = scmp.lt.s32.totalorder %s14, 1
      %s162 = scalar_select %p161, %s14, 1
      %s163 = smul.addr %s162, 3
      %s164 = smul.addr %s163, 4
      %s165 = scalar_lea.vmem %s0, %s164
      %p166 = scmp.lt.s32.totalorder %s14, 1
      %s167 = scalar_select %p166, %s14, 1
      %s168 = smul.addr %s167, 2
      %s169 = smul.addr %s168, 8
      %s170 = scalar_lea.vmem %s3, %s169
      %v171 = vld [vmem:[%s1] sm:$0xff]
      %v172 = vld [vmem:[%s2] sm:$0xff]
      %v173 = vld [vmem:[%s165] sm:$0xff]
      %v174 = vld [vmem:[%s165 + $0x8] sm:$0xf]
      %v176 = vcombine.high %v173, %v173
      %v179 = vcombine.low %v173, %v173
      %v180 = vcombine.low %v174, %v174
      %181 = vrot.lane.b32.xlu0 %v179, 127
      %v182 = vpop.permute.xlu0 %181
      %183 = vrot.lane.b32.xlu0 %v173, 127
      %v184 = vpop.permute.xlu0 %183
      %185 = vrot.lane.b32.xlu0 %v180, 127
      %v186 = vpop.permute.xlu0 %185
      %vm187 = vcmask 1039360
      %v188 = vsel %vm187, %v182, %v184
      %v189 = vsel %vm187, %v184, %v186
      %192 = vrot.lane.b32.xlu0 %v173, 126
      %v193 = vpop.permute.xlu0 %192
      %194 = vrot.lane.b32.xlu0 %v176, 126
      %v195 = vpop.permute.xlu0 %194
      %196 = vrot.lane.b32.xlu0 %v174, 126
      %v197 = vpop.permute.xlu0 %196
      %vm198 = vcmask 1031168
      %v199 = vsel %vm198, %v193, %v195
      %v200 = vsel %vm198, %v195, %v197
      %203 = vrot.lane.b32.xlu0 %v179, 112
      %v204 = vpop.permute.xlu0 %203
      %205 = vrot.lane.b32.xlu0 %v173, 112
      %v206 = vpop.permute.xlu0 %205
      %207 = vrot.lane.b32.xlu0 %v180, 112
      %v208 = vpop.permute.xlu0 %207
      %vm209 = vcmask 916480
      %v210 = vsel %vm209, %v204, %v206
      %v211 = vsel %vm209, %v206, %v208
      %214 = vrot.lane.b32.xlu0 %v173, 111
      %v215 = vpop.permute.xlu0 %214
      %216 = vrot.lane.b32.xlu0 %v176, 111
      %v217 = vpop.permute.xlu0 %216
      %218 = vrot.lane.b32.xlu0 %v174, 111
      %v219 = vpop.permute.xlu0 %218
      %vm220 = vcmask 908288
      %v221 = vsel %vm220, %v215, %v217
      %v222 = vsel %vm220, %v217, %v219
      %225 = vrot.lane.b32.xlu0 %v179, 110
      %v226 = vpop.permute.xlu0 %225
      %227 = vrot.lane.b32.xlu0 %v173, 110
      %v228 = vpop.permute.xlu0 %227
      %229 = vrot.lane.b32.xlu0 %v180, 110
      %v230 = vpop.permute.xlu0 %229
      %vm231 = vcmask 900096
      %v232 = vsel %vm231, %v226, %v228
      %v233 = vsel %vm231, %v228, %v230
      %236 = vrot.lane.b32.xlu0 %v173, 96
      %v237 = vpop.permute.xlu0 %236
      %238 = vrot.lane.b32.xlu0 %v176, 96
      %v239 = vpop.permute.xlu0 %238
      %240 = vrot.lane.b32.xlu0 %v174, 96
      %v241 = vpop.permute.xlu0 %240
      %vm242 = vcmask 785408
      %v243 = vsel %vm242, %v237, %v239
      %v244 = vsel %vm242, %v239, %v241
      %247 = vrot.lane.b32.xlu0 %v179, 95
      %v248 = vpop.permute.xlu0 %247
      %249 = vrot.lane.b32.xlu0 %v173, 95
      %v250 = vpop.permute.xlu0 %249
      %251 = vrot.lane.b32.xlu0 %v180, 95
      %v252 = vpop.permute.xlu0 %251
      %vm253 = vcmask 777216
      %v254 = vsel %vm253, %v248, %v250
      %v255 = vsel %vm253, %v250, %v252
      %258 = vrot.lane.b32.xlu0 %v173, 94
      %v259 = vpop.permute.xlu0 %258
      %260 = vrot.lane.b32.xlu0 %v176, 94
      %v261 = vpop.permute.xlu0 %260
      %262 = vrot.lane.b32.xlu0 %v174, 94
      %v263 = vpop.permute.xlu0 %262
      %vm264 = vcmask 769024
      %v265 = vsel %vm264, %v259, %v261
      %v266 = vsel %vm264, %v261, %v263
      %vm267 = vcmask 1043456
      %v268 = vsel %vm267, %v173, %v188
      %v269 = vsel %vm267, %v176, %v189
      %v270 = vsel %vm267, %v199, %v210
      %v271 = vsel %vm267, %v200, %v211
      %v272 = vsel %vm267, %v221, %v232
      %v273 = vsel %vm267, %v222, %v233
      %v274 = vsel %vm267, %v243, %v254
      %v275 = vsel %vm267, %v244, %v255
      %277 = vset.pattern.permute.xlu0 0
      %278 = vperm.xlu0 %277, %v172
      %v279 = vpop.permute.xlu0 %278
      %vm281 = vcmask 293888
      %v283 = vsel %vm281, %v171, 0
      %v285 = vsel %vm267, %v265, 0
      %v287 = vsel %vm267, %v266, 0
      %289 = vmatprep.subr.mxu0 %v269
      %290 = vmatpush1.msra.mxu0 %v268
      %291 = vmatprep.subr.mxu0 %v271
      %292 = vmatpush1.msra.mxu0 %v270
      %293 = vmatprep.subr.mxu0 %v273
      %294 = vmatpush1.msra.mxu0 %v272
      %295 = vmatprep.subr.mxu0 %v275
      %296 = vmatpush1.msra.mxu0 %v274
      %297 = vmatprep.subr.mxu0 %v287
      %298 = vmatpush1.msra.mxu0 %v285
      %299 = vmatprep.subr.mxu0 0.0
      %300 = vmatpush1.msra.mxu0 0.0
      %301 = vmatprep.subr.mxu0 0.0
      %302 = vmatpush1.msra.mxu0 0.0
      %303 = vmatprep.subr.mxu0 0.0
      %304 = vmatpush1.msra.mxu0 0.0
      %305 = vmatprep.subr.mxu0 0.0
      %306 = vmatpush1.msra.mxu0 0.0
      %307 = vmatprep.subr.mxu0 0.0
      %308 = vmatpush1.msra.mxu0 0.0
      %309 = vmatprep.subr.mxu0 0.0
      %310 = vmatpush1.msra.mxu0 0.0
      %311 = vmatprep.subr.mxu0 0.0
      %312 = vmatpush1.msra.mxu0 0.0
      %313 = vmatprep.subr.mxu0 0.0
      %314 = vmatpush1.msra.mxu0 0.0
      %315 = vmatprep.subr.mxu0 0.0
      %316 = vmatpush1.msra.mxu0 0.0
      %317 = vmatprep.subr.mxu0 0.0
      %318 = vmatpush1.msra.mxu0 0.0
      %319 = vmatprep.subr.mxu0 0.0
      %320 = vmatpush1.msra.mxu0 0.0
      %321 = vmatprep.subr.mxu0 0.0
      %322 = vmatpush1.msra.mxu0 0.0
      %323 = vmatprep.subr.mxu0 0.0
      %324 = vmatpush1.msra.mxu0 0.0
      %325 = vmatprep.subr.mxu0 0.0
      %326 = vmatpush1.msra.mxu0 0.0
      %327 = vmatprep.subr.mxu0 0.0
      %328 = vmatpush1.msra.mxu0 0.0
      %329 = vmatprep.subr.mxu0 0.0
      %330 = vmatpush1.msra.mxu0 0.0
      %331 = vmatprep.subr.mxu0 0.0
      %332 = vmatpush1.msra.mxu0 0.0
      %333 = vmatprep.subr.mxu0 0.0
      %334 = vmatpush1.msra.mxu0 0.0
      %335 = vmatprep.subr.mxu0 0.0
      %336 = vmatpush1.msra.mxu0 0.0
      %337 = vmatprep.subr.mxu0 0.0
      %338 = vmatpush1.msra.mxu0 0.0
      %339 = vmatprep.subr.mxu0 0.0
      %340 = vmatpush1.msra.mxu0 0.0
      %341 = vmatprep.subr.mxu0 0.0
      %342 = vmatpush1.msra.mxu0 0.0
      %343 = vmatprep.subr.mxu0 0.0
      %344 = vmatpush1.msra.mxu0 0.0
      %345 = vmatprep.subr.mxu0 0.0
      %346 = vmatpush1.msra.mxu0 0.0
      %347 = vmatprep.subr.mxu0 0.0
      %348 = vmatpush1.msra.mxu0 0.0
      %349 = vmatprep.subr.mxu0 0.0
      %350 = vmatpush1.msra.mxu0 0.0
      %351 = vmatprep.subr.mxu0 0.0
      %352 = vmatpush1.msra.mxu0 0.0
      %353 = vmatprep.mubr.f32.mxu0 0.0
      %354 = vmatmul.mubr.f32.gmra.mrb[0].mxu0 %v283
      %v355 = vpop.f32.mrb[0].mxu0
      %v356 = vadd.f32 %v279, %v355
      %v357 = vpop.f32.mrb[0].mxu0
      %v358 = vadd.f32 %v279, %v357
      %359 = vdwg.mxu0
      %360 = vst [vmem:[%s170] sm:$0xff] %v356
      %361 = vst [vmem:[%s170 + $0x8] sm:$0xff] %v358
      %p362 = scmp.lt.s32.totalorder %s14, 1
      %s363 = scalar_select %p362, %s14, 1
      %s364 = smul.addr %s363, 2
      %s365 = smul.addr %s364, 8
      %s366 = scalar_lea.vmem %s3, %s365
      // Predicated region
      $region33: #{conv2d_masked_pallas.1} parent=31 // pred_check
        %p367 = pneg %p100
      $region34: #{conv2d_masked_pallas.1} parent=31 // pred_check_branch
        %369 = sbr.rel (%p367) target = $region36
      $region35: #{conv2d_masked_pallas.1} parent=31 // pred_region
        _
      $region36: #{conv2d_masked_pallas.1} parent=31 // pred_fallthru
        _
    $region32: #{conv2d_masked_pallas.1} parent=5 // pred_fallthru
      _
    %p370 = scmp.le.s32.totalorder 2, %s9
    // Predicated region
    $region37: #{conv2d_masked_pallas.1} parent=5 // pred_check
      %p371 = pneg %p370
    $region38: #{conv2d_masked_pallas.1} parent=5 // pred_check_branch
      %373 = sbr.rel (%p371) target = $region40
    $region39: #{conv2d_masked_pallas.1} parent=5 // pred_region
      %s374 = ssub.s32 %s9, 2
      // Predicated region
      $region41: #{conv2d_masked_pallas.1} parent=39 // pred_check
        %p375 = pneg %p106
      $region42: #{conv2d_masked_pallas.1} parent=39 // pred_check_branch
        %377 = sbr.rel (%p375) target = $region44
      $region43: #{conv2d_masked_pallas.1} parent=39 // pred_region
        %p378 = scmp.lt.s32.totalorder %s15, 1
        %s379 = scalar_select %p378, %s15, 1
        %s380 = smul.addr %s379, 2
        %s381 = smul.addr %s380, 8
        %s382 = scalar_lea.vmem %s3, %s381
      $region44: #{conv2d_masked_pallas.1} parent=39 // pred_fallthru
        _
    $region40: #{conv2d_masked_pallas.1} parent=5 // pred_fallthru
      _
  $region6: #{conv2d_masked_pallas.1} parent=0 // loop_footer
    %s13 = sadd.s32 1, %s9
  $region7: #{conv2d_masked_pallas.1} parent=0 // loop_footer_branch
    %8 = sbr.rel target = $region3
  $region8: #{conv2d_masked_pallas.1} parent=0 // loop_exit
    _

</llo_original>
